<compile_context>
chip_gen: v7x
topology: tpu7x:2x2x1
jax: 0.10.0
libtpu: 0.0.40
codegen_flags: <defaults>
</compile_context>

<pallas_src>
import functools
import math

import jax
import jax.numpy as jnp
from jax.experimental import pallas as pl
from jax.experimental.pallas import tpu as pltpu


def _rope_kernel(q_ref, k_ref, cos_ref, sina_ref, sinb_ref, qo_ref, ko_ref, *, half):
    tb, ts = q_ref.shape
    # Hoist the sublane broadcasts once and reuse them for both q and k.
    cos = jnp.broadcast_to(cos_ref[...], (tb, ts))
    sina = jnp.broadcast_to(sina_ref[...], (tb, ts))
    sinb = jnp.broadcast_to(sinb_ref[...], (tb, ts))

    def apply(x):
        # roll(+half):      lane j receives x[j - half]  (used where local idx >= D/2)
        # roll(ts - half):  lane j receives x[j + half]  (used where local idx <  D/2)
        r_lo = pltpu.roll(x, shift=half, axis=1)
        r_hi = pltpu.roll(x, shift=ts - half, axis=1)
        return x * cos + r_lo * sina + r_hi * sinb

    qo_ref[...] = apply(q_ref[...]).astype(qo_ref.dtype)
    ko_ref[...] = apply(k_ref[...]).astype(ko_ref.dtype)


def _rope_tables(seq_len: int, dim: int):
    """cos / masked-signed-sin tables, flattened to (1, S*D), float32."""
    inv_freq = 1.0 / (10000.0 ** (jnp.arange(0, dim, 2, dtype=jnp.float32) / dim))
    t = jnp.arange(seq_len, dtype=jnp.float32)
    freqs = jnp.outer(t, inv_freq)                      # (S, D/2)
    emb = jnp.concatenate((freqs, freqs), axis=-1)      # (S, D)
    cos = jnp.cos(emb)
    sin_half = jnp.sin(freqs)                           # both halves of sin(emb)
    zeros = jnp.zeros_like(sin_half)
    sin_a = jnp.concatenate((zeros, sin_half), axis=-1)   # coeff of roll(+D/2)
    sin_b = jnp.concatenate((-sin_half, zeros), axis=-1)  # coeff of roll(-D/2)
    sd = seq_len * dim
    return cos.reshape(1, sd), sin_a.reshape(1, sd), sin_b.reshape(1, sd)


def _vmem_budget_bytes(default: int = 12 << 20) -> int:
    """Generation-aware soft budget for per-step (double-buffered) VMEM residency.

    Conservative default (12 MiB) fits v5e's 16 MiB scoped-VMEM default.  When
    the chip is queryable, use ~1/4 of physical VMEM with headroom:
    v5e/v6e (128 MiB) -> 24 MiB, v7x (64 MiB) -> 12 MiB.
    """
    try:
        info_fn = getattr(pltpu, "get_tpu_info", None)
        if info_fn is None:
            return default
        cap = int(info_fn().vmem_capacity_bytes)
        return int(min(max(cap // 4 - (4 << 20), 8 << 20), 24 << 20))
    except Exception:
        return default


def _choose_tiles(bh, sd, d, in_bytes, out_bytes, *, budget_bytes, min_steps):
    """Pick (row tile TB, lane tile TS).

    TS is a multiple of lcm(D, 128) dividing S*D (or the full S*D), so tile
    edges stay on D-segment boundaries (masked-roll wraparound is exact) and
    lanes stay 128-aligned.  TB is a multiple of 8 dividing B*H (or B*H).
    Prefer configs that fit the VMEM budget, have >= min_steps grid steps for
    pipelining / megacore sharding, then the largest tile (amortizes the
    ~0.35us per-step overhead), tie-breaking toward lane-dense tiles.
    """
    lane_unit = d * 128 // math.gcd(d, 128)             # lcm(D, 128)
    ts_cands = {sd}
    if sd % lane_unit == 0:
        ts_cands.update(t for t in range(lane_unit, sd + 1, lane_unit) if sd % t == 0)
    tb_cands = {bh}
    tb_cands.update(t for t in range(8, bh + 1, 8) if bh % t == 0)

    def footprint(tb, ts):
        # double-buffered q/k input + output tiles, plus double-buffered f32 tables
        return 2 * (2 * tb * ts * (in_bytes + out_bytes) + 3 * ts * 4)

    fitting = [(tb, ts) for tb in tb_cands for ts in ts_cands
               if footprint(tb, ts) <= budget_bytes]
    if not fitting:
        return min(tb_cands), min(ts_cands)

    def score(cand):
        tb, ts = cand
        steps = (bh // tb) * (sd // ts)
        return (steps >= min_steps, tb * ts, ts)

    return max(fitting, key=score)


def evolla_saprot_rotary(q, k, *, out_dtype=None, budget_bytes=None, min_steps=8):
    """q, k: (B, H, S, D).  Returns (q_rot, k_rot).

    Output dtype defaults to the promoted dtype (input * float32 buffers),
    matching the PyTorch module; pass out_dtype (e.g. jnp.bfloat16) to keep
    stores narrow.
    """
    B, H, Sq, D = q.shape
    Bk, Hk, Sk, Dk = k.shape
    assert (B, H, D) == (Bk, Hk, Dk)
    assert D % 2 == 0, "rotary head_dim must be even"
    # TODO(synk): the PyTorch module slices cos/sin to each tensor's own seq
    # length (Sq < Sk, e.g. cached decode); only Sq == Sk (self-attention) here.
    assert Sq == Sk, "equal q/k sequence lengths assumed"
    S, BH, SD = Sk, B * H, Sk * D

    cos, sin_a, sin_b = _rope_tables(S, D)              # (1, SD) float32 each

    out_q_dtype = out_dtype or jnp.promote_types(q.dtype, jnp.float32)
    out_k_dtype = out_dtype or jnp.promote_types(k.dtype, jnp.float32)

    if budget_bytes is None:
        budget_bytes = _vmem_budget_bytes()
    in_b = max(jnp.dtype(q.dtype).itemsize, jnp.dtype(k.dtype).itemsize)
    out_b = max(jnp.dtype(out_q_dtype).itemsize, jnp.dtype(out_k_dtype).itemsize)
    TB, TS = _choose_tiles(BH, SD, D, in_b, out_b,
                           budget_bytes=budget_bytes, min_steps=min_steps)

    q2 = q.reshape(BH, SD)                              # contiguous reshape: free
    k2 = k.reshape(BH, SD)

    grid = (BH // TB, SD // TS)
    kernel = functools.partial(_rope_kernel, half=D // 2)
    vmem_limit = int(min(2 * budget_bytes + (8 << 20), 48 << 20))

    out_q, out_k = pl.pallas_call(
        kernel,
        out_shape=(
            jax.ShapeDtypeStruct((BH, SD), out_q_dtype),
            jax.ShapeDtypeStruct((BH, SD), out_k_dtype),
        ),
        grid_spec=pltpu.PrefetchScalarGridSpec(
            num_scalar_prefetch=0,
            grid=grid,
            in_specs=[
                pl.BlockSpec((TB, TS), lambda i, j: (i, j)),   # q rows x lane tile
                pl.BlockSpec((TB, TS), lambda i, j: (i, j)),   # k rows x lane tile
                pl.BlockSpec((1, TS), lambda i, j: (0, j)),    # cos
                pl.BlockSpec((1, TS), lambda i, j: (0, j)),    # sinA
                pl.BlockSpec((1, TS), lambda i, j: (0, j)),    # sinB
            ],
            out_specs=[
                pl.BlockSpec((TB, TS), lambda i, j: (i, j)),
                pl.BlockSpec((TB, TS), lambda i, j: (i, j)),
            ],
        ),
        compiler_params=pltpu.CompilerParams(
            dimension_semantics=("parallel", "parallel"),
            vmem_limit_bytes=vmem_limit,
        ),
    )(q2, k2, cos, sin_a, sin_b)

    return out_q.reshape(B, H, S, D), out_k.reshape(B, H, S, D)


def _reference(q, k):
    # Pure-JAX reference mirroring the PyTorch forward.
    B, H, S, D = k.shape
    inv_freq = 1.0 / (10000.0 ** (jnp.arange(0, D, 2, dtype=jnp.float32) / D))
    t = jnp.arange(S, dtype=jnp.float32)
    freqs = jnp.outer(t, inv_freq)
    emb = jnp.concatenate((freqs, freqs), axis=-1)
    cos = jnp.cos(emb)[None, None, :, :]
    sin = jnp.sin(emb)[None, None, :, :]

    def rotate_half(x):
        x1, x2 = jnp.split(x, 2, axis=-1)
        return jnp.concatenate((-x2, x1), axis=-1)

    def apply(x):
        c = cos[:, :, : x.shape[-2], :]
        s = sin[:, :, : x.shape[-2], :]
        return x * c + rotate_half(x) * s

    return apply(q), apply(k)


if __name__ == "__main__":
    key = jax.random.PRNGKey(0)
    kq, kk, kq2, kk2 = jax.random.split(key, 4)

    # Case 1: small self-attention shapes (batch=2, heads=4, seq=8, head_dim=16).
    B, H, S, D = 2, 4, 8, 16
    q = jax.random.normal(kq, (B, H, S, D), dtype=jnp.float32)
    k = jax.random.normal(kk, (B, H, S, D), dtype=jnp.float32)
    q_out, k_out = evolla_saprot_rotary(q, k)
    jax.block_until_ready((q_out, k_out))
    q_ref, k_ref = _reference(q, k)
    assert q_out.shape == q.shape and k_out.shape == k.shape
    assert q_out.dtype == jnp.float32 and k_out.dtype == jnp.float32
    assert jnp.allclose(q_out, q_ref, atol=1e-5, rtol=1e-5)
    assert jnp.allclose(k_out, k_ref, atol=1e-5, rtol=1e-5)

    # Case 2: force the 2-D (row x lane) tiling path with a tiny VMEM budget so
    # the multi-step lane tiling (tile width = multiple of D and 128) is exercised.
    B2, H2, S2, D2 = 1, 8, 32, 16
    q2 = jax.random.normal(kq2, (B2, H2, S2, D2), dtype=jnp.float32)
    k2 = jax.random.normal(kk2, (B2, H2, S2, D2), dtype=jnp.float32)
    q2_out, k2_out = evolla_saprot_rotary(q2, k2, budget_bytes=40_000, min_steps=2)
    jax.block_until_ready((q2_out, k2_out))
    q2_ref, k2_ref = _reference(q2, k2)
    assert jnp.allclose(q2_out, q2_ref, atol=1e-5, rtol=1e-5)
    assert jnp.allclose(k2_out, k2_ref, atol=1e-5, rtol=1e-5)

    print("KERNEL_OK")
</pallas_src>

<mosaic_0001>
module attributes {stable_mosaic.version = 11 : i64} {
  func.func @_rope_kernel(%arg0: i32, %arg1: i32, %arg2: memref<8x128xf32, #tpu.memory_space<vmem>>, %arg3: memref<8x128xf32, #tpu.memory_space<vmem>>, %arg4: memref<1x128xf32, #tpu.memory_space<vmem>>, %arg5: memref<1x128xf32, #tpu.memory_space<vmem>>, %arg6: memref<1x128xf32, #tpu.memory_space<vmem>>, %arg7: memref<8x128xf32, #tpu.memory_space<vmem>>, %arg8: memref<8x128xf32, #tpu.memory_space<vmem>>) attributes {dimension_semantics = [#tpu.dimension_semantics<parallel>, #tpu.dimension_semantics<parallel>], iteration_bounds = array<i64: 1, 1>, scalar_prefetch = 0 : i64, scratch_operands = 0 : i64, tpu.core_type = #tpu.core_type<tc>, window_params = [{transform_indices = @transform_0, window_bounds = array<i64: 8, 128>}, {transform_indices = @transform_1, window_bounds = array<i64: 8, 128>}, {transform_indices = @transform_2, window_bounds = array<i64: 1, 128>}, {transform_indices = @transform_3, window_bounds = array<i64: 1, 128>}, {transform_indices = @transform_4, window_bounds = array<i64: 1, 128>}, {transform_indices = @transform_5, window_bounds = array<i64: 8, 128>}, {transform_indices = @transform_6, window_bounds = array<i64: 8, 128>}]} {
    %c0 = arith.constant 0 : index
    %c0_0 = arith.constant 0 : index
    %0 = vector.load %arg4[%c0, %c0_0] : memref<1x128xf32, #tpu.memory_space<vmem>>, vector<1x128xf32>
    %1 = vector.shape_cast %0 : vector<1x128xf32> to vector<1x128xf32>
    %2 = vector.broadcast %1 : vector<1x128xf32> to vector<8x128xf32>
    %c0_1 = arith.constant 0 : index
    %c0_2 = arith.constant 0 : index
    %3 = vector.load %arg5[%c0_1, %c0_2] : memref<1x128xf32, #tpu.memory_space<vmem>>, vector<1x128xf32>
    %4 = vector.shape_cast %3 : vector<1x128xf32> to vector<1x128xf32>
    %5 = vector.broadcast %4 : vector<1x128xf32> to vector<8x128xf32>
    %c0_3 = arith.constant 0 : index
    %c0_4 = arith.constant 0 : index
    %6 = vector.load %arg6[%c0_3, %c0_4] : memref<1x128xf32, #tpu.memory_space<vmem>>, vector<1x128xf32>
    %7 = vector.shape_cast %6 : vector<1x128xf32> to vector<1x128xf32>
    %8 = vector.broadcast %7 : vector<1x128xf32> to vector<8x128xf32>
    %c0_5 = arith.constant 0 : index
    %c0_6 = arith.constant 0 : index
    %9 = vector.load %arg2[%c0_5, %c0_6] : memref<8x128xf32, #tpu.memory_space<vmem>>, vector<8x128xf32>
    %c8_i32 = arith.constant 8 : i32
    %10 = tpu.dynamic_rotate %9 by %c8_i32 dim 1 : vector<8x128xf32>, i32 -> vector<8x128xf32>
    %c120_i32 = arith.constant 120 : i32
    %11 = tpu.dynamic_rotate %9 by %c120_i32 dim 1 : vector<8x128xf32>, i32 -> vector<8x128xf32>
    %12 = arith.mulf %9, %2 : vector<8x128xf32>
    %13 = arith.mulf %10, %5 : vector<8x128xf32>
    %14 = arith.addf %12, %13 : vector<8x128xf32>
    %15 = arith.mulf %11, %8 : vector<8x128xf32>
    %16 = arith.addf %14, %15 : vector<8x128xf32>
    %c0_7 = arith.constant 0 : index
    %c0_8 = arith.constant 0 : index
    %17 = vector.load %arg7[%c0_7, %c0_8] : memref<8x128xf32, #tpu.memory_space<vmem>>, vector<8x128xf32>
    tpu.vector_store %arg7[%c0_7, %c0_8], %16 {strides = array<i32>} : memref<8x128xf32, #tpu.memory_space<vmem>>, vector<8x128xf32>,
    %c0_9 = arith.constant 0 : index
    %c0_10 = arith.constant 0 : index
    %18 = vector.load %arg3[%c0_9, %c0_10] : memref<8x128xf32, #tpu.memory_space<vmem>>, vector<8x128xf32>
    %c8_i32_11 = arith.constant 8 : i32
    %19 = tpu.dynamic_rotate %18 by %c8_i32_11 dim 1 : vector<8x128xf32>, i32 -> vector<8x128xf32>
    %c120_i32_12 = arith.constant 120 : i32
    %20 = tpu.dynamic_rotate %18 by %c120_i32_12 dim 1 : vector<8x128xf32>, i32 -> vector<8x128xf32>
    %21 = arith.mulf %18, %2 : vector<8x128xf32>
    %22 = arith.mulf %19, %5 : vector<8x128xf32>
    %23 = arith.addf %21, %22 : vector<8x128xf32>
    %24 = arith.mulf %20, %8 : vector<8x128xf32>
    %25 = arith.addf %23, %24 : vector<8x128xf32>
    %c0_13 = arith.constant 0 : index
    %c0_14 = arith.constant 0 : index
    %26 = vector.load %arg8[%c0_13, %c0_14] : memref<8x128xf32, #tpu.memory_space<vmem>>, vector<8x128xf32>
    tpu.vector_store %arg8[%c0_13, %c0_14], %25 {strides = array<i32>} : memref<8x128xf32, #tpu.memory_space<vmem>>, vector<8x128xf32>,
    return
  }
  func.func @transform_0(%arg0: i32, %arg1: i32) -> (i32, i32) {
    %c0_i32 = arith.constant 0 : i32
    return %arg0, %arg1 : i32, i32
  }
  func.func @transform_1(%arg0: i32, %arg1: i32) -> (i32, i32) {
    %c0_i32 = arith.constant 0 : i32
    return %arg0, %arg1 : i32, i32
  }
  func.func @transform_2(%arg0: i32, %arg1: i32) -> (i32, i32) {
    %c0_i32 = arith.constant 0 : i32
    %c0_i32_0 = arith.constant 0 : i32
    return %c0_i32, %arg1 : i32, i32
  }
  func.func @transform_3(%arg0: i32, %arg1: i32) -> (i32, i32) {
    %c0_i32 = arith.constant 0 : i32
    %c0_i32_0 = arith.constant 0 : i32
    return %c0_i32, %arg1 : i32, i32
  }
  func.func @transform_4(%arg0: i32, %arg1: i32) -> (i32, i32) {
    %c0_i32 = arith.constant 0 : i32
    %c0_i32_0 = arith.constant 0 : i32
    return %c0_i32, %arg1 : i32, i32
  }
  func.func @transform_5(%arg0: i32, %arg1: i32) -> (i32, i32) {
    %c0_i32 = arith.constant 0 : i32
    return %arg0, %arg1 : i32, i32
  }
  func.func @transform_6(%arg0: i32, %arg1: i32) -> (i32, i32) {
    %c0_i32 = arith.constant 0 : i32
    return %arg0, %arg1 : i32, i32
  }
}

</mosaic_0001>

<llo_original>
// kernel: tpu_custom_call.1
$region0: #{tpu_custom_call.1}
  #allocation0 [shape = 'u32[]', space=smem, size = 0x4, offset = 0x4, fixed_abs, tag = 'smem constant byte address 0x4 - core index']
  #allocation1 [shape = 'u32[144,128]{1,0:T(1,128)}', space=vmem, size = 0x12000, scoped, tag = 'internal scratch']
  %s0 = inlined_call_operand.hbm [shape: f32[8,128], index: 0, kind: input, shape index: {}]
  %s1 = inlined_call_operand.hbm [shape: f32[8,128], index: 1, kind: input, shape index: {}]
  %s2 = inlined_call_operand.vmem [shape: f32[1,128], index: 2, kind: input, shape index: {}]
  %s3 = inlined_call_operand.vmem [shape: f32[1,128], index: 3, kind: input, shape index: {}]
  %s4 = inlined_call_operand.vmem [shape: f32[1,128], index: 4, kind: input, shape index: {}]
  %s5 = inlined_call_operand.hbm [shape: f32[8,128], index: 5, kind: output, shape index: {0}]
  %s6 = inlined_call_operand.hbm [shape: f32[8,128], index: 6, kind: output, shape index: {1}]
  %7 = xla_tuple %s5, %s6
  %s8 = sld [smem:[#allocation0]]
  $region46: #{tpu_custom_call.1} parent=0
    _
  %s10 = ssub.s32 1, %s8
  %s11 = scalar_select 0, %s10, %s8
  $region1: #{tpu_custom_call.1} parent=0
    #allocation2 [shape = 'u8[4096]{0}', space=vmem, size = 0x1000, scoped, tag = 'input window, operand 0, single buffered']
    #allocation3 [shape = 's32[1]{0}', space=sflag, size = 0x4, scoped, tag = 'scoped memory for tpu_custom_call.1']
    #allocation4 [shape = 's32[1]{0}', space=sflag, size = 0x4, scoped, tag = 'scoped memory for tpu_custom_call.1']
    #allocation5 [shape = 'u8[4096]{0}', space=vmem, size = 0x1000, scoped, tag = 'input window, operand 1, single buffered']
    #allocation6 [shape = 's32[1]{0}', space=sflag, size = 0x4, scoped, tag = 'scoped memory for tpu_custom_call.1']
    #allocation7 [shape = 'u8[4096]{0}', space=vmem, size = 0x1000, scoped, tag = 'output window, operand 0, single buffered']
    #allocation8 [shape = 'u8[4096]{0}', space=vmem, size = 0x1000, scoped, tag = 'output window, operand 1, single buffered']
    #allocation9 [shape = 's32[1]{0}', space=sflag, size = 0x4, scoped, tag = 'scoped memory for tpu_custom_call.1']
    %12 = vsyncpa [#allocation3], 0
    %13 = vsyncpa [#allocation6], 0
    %14 = vsyncpa [#allocation4], 0
    %15 = vsyncpa [#allocation9], 0
    // Predicated region
    $region2: #{tpu_custom_call.1} parent=1 // pred_check
      _
    $region3: #{tpu_custom_call.1} parent=1 // pred_check_branch
      %17 = sbr.rel (0) target = $region5
    $region4: #{tpu_custom_call.1} parent=1 // pred_region
      %s19 = ssub.s32 128, 128
      %20 = vsyncadd [#allocation3], %s19
      %s22 = sshll.u32 [#allocation2], 4
      %s23 = int_to_ptr.vmem [resolvable:$true] %s22
      %25 = dma.hbm_to_vmem [thread:$0]  %s0, 128, %s23, [#allocation3]
    $region5: #{tpu_custom_call.1} parent=1 // pred_fallthru
      _
    // Predicated region
    $region6: #{tpu_custom_call.1} parent=1 // pred_check
      _
    $region7: #{tpu_custom_call.1} parent=1 // pred_check_branch
      %27 = sbr.rel (0) target = $region9
    $region8: #{tpu_custom_call.1} parent=1 // pred_region
      %s29 = ssub.s32 128, 128
      %30 = vsyncadd [#allocation6], %s29
      %s32 = sshll.u32 [#allocation5], 4
      %s33 = int_to_ptr.vmem [resolvable:$true] %s32
      %35 = dma.hbm_to_vmem [thread:$0]  %s1, 128, %s33, [#allocation6]
    $region9: #{tpu_custom_call.1} parent=1 // pred_fallthru
      _
    // Predicated region
    $region10: #{tpu_custom_call.1} parent=1 // pred_check
      _
    $region11: #{tpu_custom_call.1} parent=1 // pred_check_branch
      %37 = sbr.rel (0) target = $region13
    $region12: #{tpu_custom_call.1} parent=1 // pred_region
      _
    $region13: #{tpu_custom_call.1} parent=1 // pred_fallthru
      _
    // Predicated region
    $region14: #{tpu_custom_call.1} parent=1 // pred_check
      _
    $region15: #{tpu_custom_call.1} parent=1 // pred_check_branch
      %39 = sbr.rel (0) target = $region17
    $region16: #{tpu_custom_call.1} parent=1 // pred_region
      _
    $region17: #{tpu_custom_call.1} parent=1 // pred_fallthru
      _
    // Predicated region
    $region18: #{tpu_custom_call.1} parent=1 // pred_check
      _
    $region19: #{tpu_custom_call.1} parent=1 // pred_check_branch
      %41 = sbr.rel (0) target = $region21
    $region20: #{tpu_custom_call.1} parent=1 // pred_region
      _
    $region21: #{tpu_custom_call.1} parent=1 // pred_fallthru
      _
    // Predicated region
    $region22: #{tpu_custom_call.1} parent=1 // pred_check
      _
    $region23: #{tpu_custom_call.1} parent=1 // pred_check_branch
      %43 = sbr.rel (0) target = $region25
    $region24: #{tpu_custom_call.1} parent=1 // pred_region
      %44 = dma.done [#allocation3], 128
    $region25: #{tpu_custom_call.1} parent=1 // pred_fallthru
      _
    // Predicated region
    $region26: #{tpu_custom_call.1} parent=1 // pred_check
      _
    $region27: #{tpu_custom_call.1} parent=1 // pred_check_branch
      %46 = sbr.rel (0) target = $region29
    $region28: #{tpu_custom_call.1} parent=1 // pred_region
      %47 = dma.done [#allocation6], 128
    $region29: #{tpu_custom_call.1} parent=1 // pred_fallthru
      _
    %v48 = vld [vmem:[%s2] sm:$0x1]
    %v50 = vlaneseq
    %v51 = vshrl.u32 %v50, 7
    %v52 = vsub.s32 0, %v51
    %v53 = vrot.slane %v48, %v52
    %v55 = vld [vmem:[%s3] sm:$0x1]
    %v57 = vlaneseq
    %v58 = vshrl.u32 %v57, 7
    %v59 = vsub.s32 0, %v58
    %v60 = vrot.slane %v55, %v59
    %v62 = vld [vmem:[%s4] sm:$0x1]
    %v64 = vlaneseq
    %v65 = vshrl.u32 %v64, 7
    %v66 = vsub.s32 0, %v65
    %v67 = vrot.slane %v62, %v66
    %v69 = vld [vmem:[#allocation2] sm:$0xff]
    %70 = vrot.lane.b32.xlu0 %v69, 8
    %v71 = vpop.permute.xlu0 %70
    %72 = vrot.lane.b32.xlu0 %v69, 120
    %v73 = vpop.permute.xlu0 %72
    %v74 = vmul.f32 %v69, %v53
    %v75 = vmul.f32 %v71, %v60
    %v76 = vadd.f32 %v74, %v75
    %v77 = vmul.f32 %v73, %v67
    %v78 = vadd.f32 %v76, %v77
    %79 = vst [vmem:[#allocation7] sm:$0xff] %v78
    %v80 = vld [vmem:[#allocation5] sm:$0xff]
    %81 = vrot.lane.b32.xlu0 %v80, 8
    %v82 = vpop.permute.xlu0 %81
    %83 = vrot.lane.b32.xlu0 %v80, 120
    %v84 = vpop.permute.xlu0 %83
    %v85 = vmul.f32 %v80, %v53
    %v86 = vmul.f32 %v82, %v60
    %v87 = vadd.f32 %v85, %v86
    %v88 = vmul.f32 %v84, %v67
    %v89 = vadd.f32 %v87, %v88
    %90 = vst [vmem:[#allocation8] sm:$0xff] %v89
    // Predicated region
    $region30: #{tpu_custom_call.1} parent=1 // pred_check
      _
    $region31: #{tpu_custom_call.1} parent=1 // pred_check_branch
      %92 = sbr.rel (0) target = $region33
    $region32: #{tpu_custom_call.1} parent=1 // pred_region
      %s94 = ssub.s32 128, 128
      %95 = vsyncadd [#allocation4], %s94
      %s97 = sshll.u32 [#allocation7], 4
      %s98 = int_to_ptr.vmem [resolvable:$true] %s97
      %100 = dma.vmem_to_hbm [thread:$0]  %s98, 128, %s5, [#allocation4]
    $region33: #{tpu_custom_call.1} parent=1 // pred_fallthru
      _
    // Predicated region
    $region34: #{tpu_custom_call.1} parent=1 // pred_check
      _
    $region35: #{tpu_custom_call.1} parent=1 // pred_check_branch
      %102 = sbr.rel (0) target = $region37
    $region36: #{tpu_custom_call.1} parent=1 // pred_region
      %s104 = ssub.s32 128, 128
      %105 = vsyncadd [#allocation9], %s104
      %s107 = sshll.u32 [#allocation8], 4
      %s108 = int_to_ptr.vmem [resolvable:$true] %s107
      %110 = dma.vmem_to_hbm [thread:$0]  %s108, 128, %s6, [#allocation9]
    $region37: #{tpu_custom_call.1} parent=1 // pred_fallthru
      _
    // Predicated region
    $region38: #{tpu_custom_call.1} parent=1 // pred_check
      _
    $region39: #{tpu_custom_call.1} parent=1 // pred_check_branch
      %112 = sbr.rel (0) target = $region41
    $region40: #{tpu_custom_call.1} parent=1 // pred_region
      %113 = dma.done [#allocation4], 128
    $region41: #{tpu_custom_call.1} parent=1 // pred_fallthru
      _
    // Predicated region
    $region42: #{tpu_custom_call.1} parent=1 // pred_check
      _
    $region43: #{tpu_custom_call.1} parent=1 // pred_check_branch
      %115 = sbr.rel (0) target = $region45
    $region44: #{tpu_custom_call.1} parent=1 // pred_region
      %116 = dma.done [#allocation9], 128
    $region45: #{tpu_custom_call.1} parent=1 // pred_fallthru
      _
    %117 = vsyncpa [#allocation3], 1
    %118 = vsyncpa [#allocation6], 1
    %119 = vsyncpa [#allocation4], 1
    %120 = vsyncpa [#allocation9], 1

</llo_original>
